<compile_context>
chip_gen: v5e
topology: v5e:2x2
jax: 0.10.0
libtpu: 0.0.40
codegen_flags: <defaults>
</compile_context>

<pallas_src>
import jax
import jax.numpy as jnp
from jax.experimental import pallas as pl
from jax.experimental.pallas import tpu as pltpu

_LANE = 128
_SMALL_FAST_PATH_BYTES = 512 * 1024  # below this, fused XLA maximum wins


def _relu_kernel(x_ref, o_ref):
    # One VPU max per vreg; DMA / load / store slots saturate long before this.
    o_ref[...] = jnp.maximum(x_ref[...], 0)


def _round_up(v, m):
    return ((v + m - 1) // m) * m


def _tpu_tiling_params():
    """Generation-aware (block cap in bytes, min grid steps for megacore)."""
    try:
        kind = jax.devices()[0].device_kind.lower()
    except Exception:
        kind = ""
    if "v7" in kind:
        # v7x: 64 MiB VMEM per TC -> 4 MiB blocks keep the pipelined footprint
        # (2 bufs in + 2 bufs out = 16 MiB) safe, and we want >= 2 blocks per
        # TensorCore (grid >= 4) so both cores overlap DMA prologue/epilogue.
        return 4 << 20, 4
    if "v6" in kind:
        # v6e: 32 MiB scoped default -> 4 MiB blocks (16 MiB pipelined) fit.
        return 4 << 20, 1
    # v5e and unknown: 16 MiB scoped default -> stay at 2 MiB blocks.
    return 2 << 20, 1


def relu_pallas(x: jax.Array, *, force_pallas: bool = False) -> jax.Array:
    """ReLU = max(0, x) for any float shape (HBM-bandwidth-bound elementwise)."""
    orig_shape = x.shape
    dtype = x.dtype
    n = x.size
    if n == 0:
        return x

    itemsize = jnp.dtype(dtype).itemsize
    total_bytes = n * itemsize

    # Small-tensor fast path: launch/grid overhead dominates tiny tensors and
    # the plain XLA op fuses with its producer/consumer.
    if total_bytes < _SMALL_FAST_PATH_BYTES and not force_pallas:
        return jnp.maximum(x, 0)

    cap_bytes, min_steps = _tpu_tiling_params()
    if total_bytes < (4 << 20):
        # Not enough data to justify splitting across cores / extra grid steps.
        min_steps = 1

    # Sublane packing granularity: f32 -> 8, bf16/f16 -> 16, int8/fp8 -> 32.
    sub_mult = max(8, 32 // itemsize)

    x_flat = jnp.reshape(x, (n,))  # row-major reshape: free (bitcast)

    # TODO(synk): for forward-only / donated inputs, input_output_aliases={0: 0}
    # would let ReLU run in place; omitted because the caller reuses x here.

    if n % _LANE == 0:
        # Lane-dense (rows, 128) slab: densest vreg layout, unmasked stores.
        rows = n // _LANE
        x2d = jnp.reshape(x_flat, (rows, _LANE))

        cap_rows = max(
            sub_mult, (cap_bytes // (_LANE * itemsize)) // sub_mult * sub_mult
        )
        if rows <= sub_mult:
            block_rows = rows  # tiny: full-extent block (exempt from (8,128) rule)
        else:
            target = _round_up(pl.cdiv(rows, min_steps), sub_mult)
            block_rows = min(cap_rows, target)
        grid = (pl.cdiv(rows, block_rows),)
        block_bytes = block_rows * _LANE * itemsize

        out2d = pl.pallas_call(
            _relu_kernel,
            out_shape=jax.ShapeDtypeStruct((rows, _LANE), dtype),
            grid=grid,
            in_specs=[pl.BlockSpec((block_rows, _LANE), lambda i: (i, 0))],
            out_specs=pl.BlockSpec((block_rows, _LANE), lambda i: (i, 0)),
            compiler_params=pltpu.CompilerParams(
                dimension_semantics=("parallel",),
                # explicit headroom: 4 buffers (in+out, double-buffered) + slack
                vmem_limit_bytes=max(8 << 20, 4 * block_bytes + (2 << 20)),
            ),
        )(x2d)
        return jnp.reshape(out2d, orig_shape)

    # Unaligned flat length: run on the original data with a partial last
    # lane-block (Pallas masks out-of-bounds output writes) instead of padding.
    # The (1, n) view is less sublane-dense in VMEM than (rows, 128), so keep
    # blocks modest; this still avoids the 2 extra HBM passes of pad + slice.
    x2d = jnp.reshape(x_flat, (1, n))
    elem_mult = sub_mult * _LANE
    cap_cols = 64 * 1024  # 64K elems/step; ~2 MiB/buffer worst case in VMEM
    target = _round_up(pl.cdiv(n, min_steps), elem_mult)
    block_cols = min(cap_cols, target)
    grid = (pl.cdiv(n, block_cols),)

    out2d = pl.pallas_call(
        _relu_kernel,
        out_shape=jax.ShapeDtypeStruct((1, n), dtype),
        grid=grid,
        in_specs=[pl.BlockSpec((1, block_cols), lambda i: (0, i))],
        out_specs=pl.BlockSpec((1, block_cols), lambda i: (0, i)),
        compiler_params=pltpu.CompilerParams(
            dimension_semantics=("parallel",),
            vmem_limit_bytes=16 << 20,
        ),
    )(x2d)
    return jnp.reshape(out2d, orig_shape)


if __name__ == "__main__":
    key = jax.random.PRNGKey(0)
    # NCHW input, consistent with a PyTorch conv-style activation tensor.
    x = jax.random.normal(key, (2, 4, 16, 16), dtype=jnp.float32)
    ref = jnp.maximum(0.0, x)

    # 1) default call: small tensor -> fused XLA fast path
    out_fast = jax.block_until_ready(relu_pallas(x))
    assert out_fast.shape == x.shape and out_fast.dtype == x.dtype
    assert jnp.array_equal(out_fast, ref), "fast path mismatch vs reference ReLU"

    # 2) force the Pallas kernel: lane-aligned (rows, 128) path
    out_pallas = jax.block_until_ready(relu_pallas(x, force_pallas=True))
    assert out_pallas.shape == x.shape and out_pallas.dtype == x.dtype
    assert jnp.array_equal(out_pallas, ref), "pallas path mismatch vs reference ReLU"

    # 3) unaligned flat length (777 elems): partial-last-block path, no pad/slice
    y = jax.random.normal(jax.random.PRNGKey(0), (3, 7, 37), dtype=jnp.float32)
    out_y = jax.block_until_ready(relu_pallas(y, force_pallas=True))
    assert jnp.array_equal(out_y, jnp.maximum(0.0, y)), "unaligned path mismatch"

    print("KERNEL_OK")
</pallas_src>

<mosaic_0001>
module attributes {stable_mosaic.version = 11 : i64} {
  func.func @_relu_kernel(%arg0: i32, %arg1: memref<16x128xf32, #tpu.memory_space<vmem>>, %arg2: memref<16x128xf32, #tpu.memory_space<vmem>>) attributes {dimension_semantics = [#tpu.dimension_semantics<parallel>], iteration_bounds = array<i64: 1>, scalar_prefetch = 0 : i64, scratch_operands = 0 : i64, tpu.core_type = #tpu.core_type<tc>, window_params = [{transform_indices = @transform_0, window_bounds = array<i64: 16, 128>}, {transform_indices = @transform_1, window_bounds = array<i64: 16, 128>}]} {
    %c0 = arith.constant 0 : index
    %c0_0 = arith.constant 0 : index
    %0 = vector.load %arg1[%c0, %c0_0] : memref<16x128xf32, #tpu.memory_space<vmem>>, vector<16x128xf32>
    %cst = arith.constant 0.000000e+00 : f32
    %1 = vector.broadcast %cst : f32 to vector<16x128xf32>
    %2 = arith.maximumf %0, %1 : vector<16x128xf32>
    %c0_1 = arith.constant 0 : index
    %c0_2 = arith.constant 0 : index
    %3 = vector.load %arg2[%c0_1, %c0_2] : memref<16x128xf32, #tpu.memory_space<vmem>>, vector<16x128xf32>
    tpu.vector_store %arg2[%c0_1, %c0_2], %2 {strides = array<i32>} : memref<16x128xf32, #tpu.memory_space<vmem>>, vector<16x128xf32>,
    return
  }
  func.func @transform_0(%arg0: i32) -> (i32, i32) {
    %c0_i32 = arith.constant 0 : i32
    %c0_i32_0 = arith.constant 0 : i32
    return %arg0, %c0_i32 : i32, i32
  }
  func.func @transform_1(%arg0: i32) -> (i32, i32) {
    %c0_i32 = arith.constant 0 : i32
    %c0_i32_0 = arith.constant 0 : i32
    return %arg0, %c0_i32 : i32, i32
  }
}

</mosaic_0001>

<llo_original>
// kernel: tpu_custom_call.1
$region0: #{tpu_custom_call.1}
  #allocation0 [shape = 'u32[]', space=smem, size = 0x4, offset = 0x4, fixed_abs, tag = 'smem constant byte address 0x4 - core index']
  #allocation1 [shape = 'u32[72,128]{1,0:T(1,128)}', space=vmem, size = 0x9000, scoped, tag = 'internal scratch']
  %s0 = inlined_call_operand.hbm [shape: f32[16,128], index: 0, kind: input, shape index: {}]
  %s1 = inlined_call_operand.hbm [shape: f32[16,128], index: 1, kind: output, shape index: {}]
  %s2 = sld [smem:[#allocation0]]
  $region18: #{tpu_custom_call.1} parent=0
    _
  %s4 = ssub.s32 1, %s2
  %s5 = scalar_select 0, %s4, %s2
  $region1: #{tpu_custom_call.1} parent=0
    #allocation2 [shape = 'u8[8192]{0}', space=vmem, size = 0x2000, scoped, tag = 'input window, operand 0, single buffered']
    #allocation3 [shape = 's32[1]{0}', space=sflag, size = 0x4, scoped, tag = 'scoped memory for tpu_custom_call.1']
    #allocation4 [shape = 's32[1]{0}', space=sflag, size = 0x4, scoped, tag = 'scoped memory for tpu_custom_call.1']
    #allocation5 [shape = 'u8[8192]{0}', space=vmem, size = 0x2000, scoped, tag = 'output window, operand 0, single buffered']
    %6 = vsyncpa [#allocation3], 0
    %7 = vsyncpa [#allocation4], 0
    // Predicated region
    $region2: #{tpu_custom_call.1} parent=1 // pred_check
      _
    $region3: #{tpu_custom_call.1} parent=1 // pred_check_branch
      %9 = sbr.rel (0) target = $region5
    $region4: #{tpu_custom_call.1} parent=1 // pred_region
      %11 = vsyncadd [#allocation3], 0
      %s12 = sshll.u32 %s0, 4
      %s13 = int_to_ptr.hbm [resolvable:$true] %s12
      %s14 = sshll.u32 [#allocation2], 4
      %s15 = int_to_ptr.vmem [resolvable:$true] %s14
      %20 = dma.hbm_to_vmem [thread:$0]  %s13, 256, %s15, [#allocation3], 128, 128, 8
    $region5: #{tpu_custom_call.1} parent=1 // pred_fallthru
      _
    // Predicated region
    $region6: #{tpu_custom_call.1} parent=1 // pred_check
      _
    $region7: #{tpu_custom_call.1} parent=1 // pred_check_branch
      %22 = sbr.rel (0) target = $region9
    $region8: #{tpu_custom_call.1} parent=1 // pred_region
      %24 = dma.done [#allocation3], 256
    $region9: #{tpu_custom_call.1} parent=1 // pred_fallthru
      _
    %v25 = vld [vmem:[#allocation2] sm:$0xff]
    %v26 = vld [vmem:[#allocation2 + $0x8] sm:$0xff]
    %v27 = vmax.f32 %v25, 0.0
    %v28 = vmax.f32 %v26, 0.0
    %29 = vst [vmem:[#allocation5] sm:$0xff] %v27
    %30 = vst [vmem:[#allocation5 + $0x8] sm:$0xff] %v28
    // Predicated region
    $region10: #{tpu_custom_call.1} parent=1 // pred_check
      _
    $region11: #{tpu_custom_call.1} parent=1 // pred_check_branch
      %32 = sbr.rel (0) target = $region13
    $region12: #{tpu_custom_call.1} parent=1 // pred_region
      %34 = vsyncadd [#allocation4], 0
      %s35 = sshll.u32 [#allocation5], 4
      %s36 = int_to_ptr.vmem [resolvable:$true] %s35
      %s37 = sshll.u32 %s1, 4
      %s38 = int_to_ptr.hbm [resolvable:$true] %s37
      %43 = dma.vmem_to_hbm [thread:$0]  %s36, 256, %s38, [#allocation4], 128, 128, 8
    $region13: #{tpu_custom_call.1} parent=1 // pred_fallthru
      _
    // Predicated region
    $region14: #{tpu_custom_call.1} parent=1 // pred_check
      _
    $region15: #{tpu_custom_call.1} parent=1 // pred_check_branch
      %45 = sbr.rel (0) target = $region17
    $region16: #{tpu_custom_call.1} parent=1 // pred_region
      %47 = dma.done [#allocation4], 256
    $region17: #{tpu_custom_call.1} parent=1 // pred_fallthru
      _
    %48 = vsyncpa [#allocation3], 1
    %49 = vsyncpa [#allocation4], 1

</llo_original>
